<compile_context>
chip_gen: v5e
topology: v5e:2x2
jax: 0.10.0
libtpu: 0.0.40
codegen_flags: <defaults>
</compile_context>

<pallas_src>
import math
import jax
import jax.numpy as jnp
from jax.experimental import pallas as pl
from jax.experimental.pallas import tpu as pltpu

_SQRT_HALF = 1.0 / math.sqrt(2.0)


def _gelu_exact(x):
    # Matches torch.nn.GELU() default (erf-based, not tanh approximation).
    # NOTE: erf lowers to a VALU polynomial on TPU, not an EUP transcendental.
    return 0.5 * x * (1.0 + jax.lax.erf(x * _SQRT_HALF))


def _round_up(x, m):
    return ((x + m - 1) // m) * m


def mlp_kernel(a0_ref, a1_ref,        # SMEM scalar-prefetch ids: (B,) int32 each
               embl_ref, embr_ref,    # (N, 2E) zero-extended tables (VMEM)
               w1_ref, b1_ref,        # (2E, H), (1, H)
               w2_ref, b2_ref,        # (H, Np), (1, Np)
               o_ref,                 # (Bp, Np) lane-dense padded logits
               x_ref):                # VMEM scratch (Bp, 2E) concatenated acts
    B = a0_ref.shape[0]
    hi = jax.lax.Precision.HIGHEST

    # In-kernel embedding gather + concat: ids are SMEM scalars; each table row
    # is a dynamic sublane slice.  Left table fills cols [0:E], right table fills
    # cols [E:2E] (the other half of each is zero), so their sum is the exact
    # concatenation.  B is tiny and static -> the loop is fully unrolled.
    x_ref[...] = jnp.zeros_like(x_ref)          # padded batch rows stay zero
    for b in range(B):
        row = (embl_ref[pl.ds(a0_ref[b], 1), :]
               + embr_ref[pl.ds(a1_ref[b], 1), :])        # (1, 2E)
        x_ref[pl.ds(b, 1), :] = row

    # Single merged Linear1 GEMM over the concatenated activations.
    h = jnp.dot(x_ref[...], w1_ref[...], precision=hi,
                preferred_element_type=jnp.float32) + b1_ref[...]
    h = _gelu_exact(h)

    out = jnp.dot(h, w2_ref[...], precision=hi,
                  preferred_element_type=jnp.float32) + b2_ref[...]
    o_ref[...] = out.astype(o_ref.dtype)


def mlp_forward(a, emb_left, emb_right, w1, b1, w2, b2):
    """a: (2, B) int token ids.  Returns logits (B, N) matching the torch MLP."""
    B = a.shape[1]
    N, E = emb_left.shape
    H = w1.shape[0]          # nn.Linear weight is (out_features, in_features)

    Bp = _round_up(B, 8)      # sublane multiple for the output tile
    Np = _round_up(N, 128)    # lane-dense output store (no vst.msk)

    f32 = jnp.float32
    a0 = a[0].astype(jnp.int32)
    a1 = a[1].astype(jnp.int32)
    # Zero-extend tables to width 2E so gather(left)+gather(right) == concat.
    embl = jnp.pad(emb_left.astype(f32), ((0, 0), (0, E)))   # (N, 2E) cols [0:E]
    embr = jnp.pad(emb_right.astype(f32), ((0, 0), (E, 0)))  # (N, 2E) cols [E:2E]
    w1t = w1.astype(f32).T                                   # (2E, H) merged
    b1p = b1.astype(f32).reshape(1, H)
    w2p = jnp.pad(w2.astype(f32).T, ((0, 0), (0, Np - N)))   # (H, Np)
    b2p = jnp.pad(b2.astype(f32), (0, Np - N)).reshape(1, Np)

    cost = pl.CostEstimate(
        flops=2 * Bp * (2 * E * H + H * Np),
        transcendentals=Bp * H,   # advisory only (erf is a VALU polynomial)
        bytes_accessed=4 * (2 * B + 2 * N * 2 * E + 2 * E * H + H
                            + H * Np + Np + Bp * Np),
    )

    full = lambda i, a0_ids, a1_ids: (0, 0)
    grid_spec = pltpu.PrefetchScalarGridSpec(
        num_scalar_prefetch=2,          # a0, a1 land in SMEM
        grid=(1,),
        in_specs=[
            pl.BlockSpec((N, 2 * E), full),   # emb_left  (zero-extended)
            pl.BlockSpec((N, 2 * E), full),   # emb_right (zero-extended)
            pl.BlockSpec((2 * E, H), full),   # W1^T (merged halves)
            pl.BlockSpec((1, H), full),       # b1
            pl.BlockSpec((H, Np), full),      # W2^T
            pl.BlockSpec((1, Np), full),      # b2
        ],
        out_specs=pl.BlockSpec((Bp, Np), full),
        scratch_shapes=[pltpu.VMEM((Bp, 2 * E), f32)],
    )

    out = pl.pallas_call(
        mlp_kernel,
        out_shape=jax.ShapeDtypeStruct((Bp, Np), f32),
        grid_spec=grid_spec,
        compiler_params=pltpu.CompilerParams(dimension_semantics=("arbitrary",)),
        cost_estimate=cost,
    )(a0, a1, embl, embr, w1t, b1p, w2p, b2p)
    return out[:B, :N]


def _reference_forward(a, emb_left, emb_right, w1, b1, w2, b2):
    hi = jax.lax.Precision.HIGHEST
    x1 = jnp.take(emb_left, a[0], axis=0)
    x2 = jnp.take(emb_right, a[1], axis=0)
    x12 = jnp.concatenate([x1, x2], axis=-1)
    h = jnp.dot(x12, w1.T, precision=hi) + b1
    h = _gelu_exact(h)
    return jnp.dot(h, w2.T, precision=hi) + b2


if __name__ == "__main__":
    # Small shapes consistent with the module's params:
    #   N (vocab) = 64, embed_dim = 16, hidden_size = 32, activation = 'gelu'
    N, embed_dim, hidden_size, batch = 64, 16, 32, 8

    key = jax.random.PRNGKey(0)
    k_el, k_er, k_w1, k_b1, k_w2, k_b2, k_a = jax.random.split(key, 7)

    emb_left = jax.random.normal(k_el, (N, embed_dim), jnp.float32)
    emb_right = jax.random.normal(k_er, (N, embed_dim), jnp.float32)
    # nn.Linear weight shape is (out_features, in_features).
    lim1 = 1.0 / math.sqrt(embed_dim * 2)
    w1 = jax.random.uniform(k_w1, (hidden_size, embed_dim * 2), jnp.float32, -lim1, lim1)
    b1 = jax.random.uniform(k_b1, (hidden_size,), jnp.float32, -lim1, lim1)
    lim2 = 1.0 / math.sqrt(hidden_size)
    w2 = jax.random.uniform(k_w2, (N, hidden_size), jnp.float32, -lim2, lim2)
    b2 = jax.random.uniform(k_b2, (N,), jnp.float32, -lim2, lim2)

    # Input: a[0], a[1] are token index vectors of length `batch`.
    a = jax.random.randint(k_a, (2, batch), 0, N, jnp.int32)

    out = mlp_forward(a, emb_left, emb_right, w1, b1, w2, b2)
    out = jax.block_until_ready(out)

    ref = _reference_forward(a, emb_left, emb_right, w1, b1, w2, b2)
    assert out.shape == (batch, N)
    assert jnp.allclose(out, ref, atol=1e-4, rtol=1e-4), "mismatch vs reference"

    print("KERNEL_OK")
</pallas_src>

<mosaic_0001>
module attributes {stable_mosaic.version = 11 : i64} {
  func.func @mlp_kernel(%arg0: i32, %arg1: memref<8xi32, #tpu.memory_space<smem>>, %arg2: memref<8xi32, #tpu.memory_space<smem>>, %arg3: memref<64x32xf32, #tpu.memory_space<vmem>>, %arg4: memref<64x32xf32, #tpu.memory_space<vmem>>, %arg5: memref<32x32xf32, #tpu.memory_space<vmem>>, %arg6: memref<1x32xf32, #tpu.memory_space<vmem>>, %arg7: memref<32x128xf32, #tpu.memory_space<vmem>>, %arg8: memref<1x128xf32, #tpu.memory_space<vmem>>, %arg9: memref<8x128xf32, #tpu.memory_space<vmem>>, %arg10: memref<8x32xf32, #tpu.memory_space<vmem>>) attributes {dimension_semantics = [#tpu.dimension_semantics<arbitrary>], iteration_bounds = array<i64: 1>, scalar_prefetch = 2 : i64, scratch_operands = 1 : i64, tpu.core_type = #tpu.core_type<tc>, window_params = [{pipeline_mode = #tpu.pipeline_mode<synchronous>, transform_indices = @transform_0, window_bounds = array<i64: 64, 32>}, {pipeline_mode = #tpu.pipeline_mode<synchronous>, transform_indices = @transform_1, window_bounds = array<i64: 64, 32>}, {pipeline_mode = #tpu.pipeline_mode<synchronous>, transform_indices = @transform_2, window_bounds = array<i64: 32, 32>}, {pipeline_mode = #tpu.pipeline_mode<synchronous>, transform_indices = @transform_3, window_bounds = array<i64: 1, 32>}, {pipeline_mode = #tpu.pipeline_mode<synchronous>, transform_indices = @transform_4, window_bounds = array<i64: 32, 128>}, {pipeline_mode = #tpu.pipeline_mode<synchronous>, transform_indices = @transform_5, window_bounds = array<i64: 1, 128>}, {pipeline_mode = #tpu.pipeline_mode<synchronous>, transform_indices = @transform_6, window_bounds = array<i64: 8, 128>}]} {
    %cst = arith.constant 0.000000e+00 : f32
    %0 = vector.broadcast %cst : f32 to vector<8x32xf32>
    %c0 = arith.constant 0 : index
    %c0_0 = arith.constant 0 : index
    %1 = vector.load %arg10[%c0, %c0_0] : memref<8x32xf32, #tpu.memory_space<vmem>>, vector<8x32xf32>
    tpu.vector_store %arg10[%c0, %c0_0], %0 {strides = array<i32>} : memref<8x32xf32, #tpu.memory_space<vmem>>, vector<8x32xf32>,
    %c0_1 = arith.constant 0 : index
    %2 = memref.load %arg1[%c0_1] : memref<8xi32, #tpu.memory_space<smem>>
    %3 = arith.index_cast %2 : i32 to index
    %c0_2 = arith.constant 0 : index
    %4 = vector.load %arg3[%3, %c0_2] : memref<64x32xf32, #tpu.memory_space<vmem>>, vector<1x32xf32>
    %c0_3 = arith.constant 0 : index
    %5 = memref.load %arg2[%c0_3] : memref<8xi32, #tpu.memory_space<smem>>
    %6 = arith.index_cast %5 : i32 to index
    %c0_4 = arith.constant 0 : index
    %7 = vector.load %arg4[%6, %c0_4] : memref<64x32xf32, #tpu.memory_space<vmem>>, vector<1x32xf32>
    %8 = arith.addf %4, %7 : vector<1x32xf32>
    %c0_5 = arith.constant 0 : index
    %c0_6 = arith.constant 0 : index
    %9 = vector.load %arg10[%c0_5, %c0_6] : memref<8x32xf32, #tpu.memory_space<vmem>>, vector<1x32xf32>
    tpu.vector_store %arg10[%c0_5, %c0_6], %8 {strides = array<i32>} : memref<8x32xf32, #tpu.memory_space<vmem>>, vector<1x32xf32>,
    %c1 = arith.constant 1 : index
    %10 = memref.load %arg1[%c1] : memref<8xi32, #tpu.memory_space<smem>>
    %11 = arith.index_cast %10 : i32 to index
    %c0_7 = arith.constant 0 : index
    %12 = vector.load %arg3[%11, %c0_7] : memref<64x32xf32, #tpu.memory_space<vmem>>, vector<1x32xf32>
    %c1_8 = arith.constant 1 : index
    %13 = memref.load %arg2[%c1_8] : memref<8xi32, #tpu.memory_space<smem>>
    %14 = arith.index_cast %13 : i32 to index
    %c0_9 = arith.constant 0 : index
    %15 = vector.load %arg4[%14, %c0_9] : memref<64x32xf32, #tpu.memory_space<vmem>>, vector<1x32xf32>
    %16 = arith.addf %12, %15 : vector<1x32xf32>
    %c1_10 = arith.constant 1 : index
    %c0_11 = arith.constant 0 : index
    %17 = vector.load %arg10[%c1_10, %c0_11] : memref<8x32xf32, #tpu.memory_space<vmem>>, vector<1x32xf32>
    tpu.vector_store %arg10[%c1_10, %c0_11], %16 {strides = array<i32>} : memref<8x32xf32, #tpu.memory_space<vmem>>, vector<1x32xf32>,
    %c2 = arith.constant 2 : index
    %18 = memref.load %arg1[%c2] : memref<8xi32, #tpu.memory_space<smem>>
    %19 = arith.index_cast %18 : i32 to index
    %c0_12 = arith.constant 0 : index
    %20 = vector.load %arg3[%19, %c0_12] : memref<64x32xf32, #tpu.memory_space<vmem>>, vector<1x32xf32>
    %c2_13 = arith.constant 2 : index
    %21 = memref.load %arg2[%c2_13] : memref<8xi32, #tpu.memory_space<smem>>
    %22 = arith.index_cast %21 : i32 to index
    %c0_14 = arith.constant 0 : index
    %23 = vector.load %arg4[%22, %c0_14] : memref<64x32xf32, #tpu.memory_space<vmem>>, vector<1x32xf32>
    %24 = arith.addf %20, %23 : vector<1x32xf32>
    %c2_15 = arith.constant 2 : index
    %c0_16 = arith.constant 0 : index
    %25 = vector.load %arg10[%c2_15, %c0_16] : memref<8x32xf32, #tpu.memory_space<vmem>>, vector<1x32xf32>
    tpu.vector_store %arg10[%c2_15, %c0_16], %24 {strides = array<i32>} : memref<8x32xf32, #tpu.memory_space<vmem>>, vector<1x32xf32>,
    %c3 = arith.constant 3 : index
    %26 = memref.load %arg1[%c3] : memref<8xi32, #tpu.memory_space<smem>>
    %27 = arith.index_cast %26 : i32 to index
    %c0_17 = arith.constant 0 : index
    %28 = vector.load %arg3[%27, %c0_17] : memref<64x32xf32, #tpu.memory_space<vmem>>, vector<1x32xf32>
    %c3_18 = arith.constant 3 : index
    %29 = memref.load %arg2[%c3_18] : memref<8xi32, #tpu.memory_space<smem>>
    %30 = arith.index_cast %29 : i32 to index
    %c0_19 = arith.constant 0 : index
    %31 = vector.load %arg4[%30, %c0_19] : memref<64x32xf32, #tpu.memory_space<vmem>>, vector<1x32xf32>
    %32 = arith.addf %28, %31 : vector<1x32xf32>
    %c3_20 = arith.constant 3 : index
    %c0_21 = arith.constant 0 : index
    %33 = vector.load %arg10[%c3_20, %c0_21] : memref<8x32xf32, #tpu.memory_space<vmem>>, vector<1x32xf32>
    tpu.vector_store %arg10[%c3_20, %c0_21], %32 {strides = array<i32>} : memref<8x32xf32, #tpu.memory_space<vmem>>, vector<1x32xf32>,
    %c4 = arith.constant 4 : index
    %34 = memref.load %arg1[%c4] : memref<8xi32, #tpu.memory_space<smem>>
    %35 = arith.index_cast %34 : i32 to index
    %c0_22 = arith.constant 0 : index
    %36 = vector.load %arg3[%35, %c0_22] : memref<64x32xf32, #tpu.memory_space<vmem>>, vector<1x32xf32>
    %c4_23 = arith.constant 4 : index
    %37 = memref.load %arg2[%c4_23] : memref<8xi32, #tpu.memory_space<smem>>
    %38 = arith.index_cast %37 : i32 to index
    %c0_24 = arith.constant 0 : index
    %39 = vector.load %arg4[%38, %c0_24] : memref<64x32xf32, #tpu.memory_space<vmem>>, vector<1x32xf32>
    %40 = arith.addf %36, %39 : vector<1x32xf32>
    %c4_25 = arith.constant 4 : index
    %c0_26 = arith.constant 0 : index
    %41 = vector.load %arg10[%c4_25, %c0_26] : memref<8x32xf32, #tpu.memory_space<vmem>>, vector<1x32xf32>
    tpu.vector_store %arg10[%c4_25, %c0_26], %40 {strides = array<i32>} : memref<8x32xf32, #tpu.memory_space<vmem>>, vector<1x32xf32>,
    %c5 = arith.constant 5 : index
    %42 = memref.load %arg1[%c5] : memref<8xi32, #tpu.memory_space<smem>>
    %43 = arith.index_cast %42 : i32 to index
    %c0_27 = arith.constant 0 : index
    %44 = vector.load %arg3[%43, %c0_27] : memref<64x32xf32, #tpu.memory_space<vmem>>, vector<1x32xf32>
    %c5_28 = arith.constant 5 : index
    %45 = memref.load %arg2[%c5_28] : memref<8xi32, #tpu.memory_space<smem>>
    %46 = arith.index_cast %45 : i32 to index
    %c0_29 = arith.constant 0 : index
    %47 = vector.load %arg4[%46, %c0_29] : memref<64x32xf32, #tpu.memory_space<vmem>>, vector<1x32xf32>
    %48 = arith.addf %44, %47 : vector<1x32xf32>
    %c5_30 = arith.constant 5 : index
    %c0_31 = arith.constant 0 : index
    %49 = vector.load %arg10[%c5_30, %c0_31] : memref<8x32xf32, #tpu.memory_space<vmem>>, vector<1x32xf32>
    tpu.vector_store %arg10[%c5_30, %c0_31], %48 {strides = array<i32>} : memref<8x32xf32, #tpu.memory_space<vmem>>, vector<1x32xf32>,
    %c6 = arith.constant 6 : index
    %50 = memref.load %arg1[%c6] : memref<8xi32, #tpu.memory_space<smem>>
    %51 = arith.index_cast %50 : i32 to index
    %c0_32 = arith.constant 0 : index
    %52 = vector.load %arg3[%51, %c0_32] : memref<64x32xf32, #tpu.memory_space<vmem>>, vector<1x32xf32>
    %c6_33 = arith.constant 6 : index
    %53 = memref.load %arg2[%c6_33] : memref<8xi32, #tpu.memory_space<smem>>
    %54 = arith.index_cast %53 : i32 to index
    %c0_34 = arith.constant 0 : index
    %55 = vector.load %arg4[%54, %c0_34] : memref<64x32xf32, #tpu.memory_space<vmem>>, vector<1x32xf32>
    %56 = arith.addf %52, %55 : vector<1x32xf32>
    %c6_35 = arith.constant 6 : index
    %c0_36 = arith.constant 0 : index
    %57 = vector.load %arg10[%c6_35, %c0_36] : memref<8x32xf32, #tpu.memory_space<vmem>>, vector<1x32xf32>
    tpu.vector_store %arg10[%c6_35, %c0_36], %56 {strides = array<i32>} : memref<8x32xf32, #tpu.memory_space<vmem>>, vector<1x32xf32>,
    %c7 = arith.constant 7 : index
    %58 = memref.load %arg1[%c7] : memref<8xi32, #tpu.memory_space<smem>>
    %59 = arith.index_cast %58 : i32 to index
    %c0_37 = arith.constant 0 : index
    %60 = vector.load %arg3[%59, %c0_37] : memref<64x32xf32, #tpu.memory_space<vmem>>, vector<1x32xf32>
    %c7_38 = arith.constant 7 : index
    %61 = memref.load %arg2[%c7_38] : memref<8xi32, #tpu.memory_space<smem>>
    %62 = arith.index_cast %61 : i32 to index
    %c0_39 = arith.constant 0 : index
    %63 = vector.load %arg4[%62, %c0_39] : memref<64x32xf32, #tpu.memory_space<vmem>>, vector<1x32xf32>
    %64 = arith.addf %60, %63 : vector<1x32xf32>
    %c7_40 = arith.constant 7 : index
    %c0_41 = arith.constant 0 : index
    %65 = vector.load %arg10[%c7_40, %c0_41] : memref<8x32xf32, #tpu.memory_space<vmem>>, vector<1x32xf32>
    tpu.vector_store %arg10[%c7_40, %c0_41], %64 {strides = array<i32>} : memref<8x32xf32, #tpu.memory_space<vmem>>, vector<1x32xf32>,
    %c0_42 = arith.constant 0 : index
    %c0_43 = arith.constant 0 : index
    %66 = vector.load %arg10[%c0_42, %c0_43] : memref<8x32xf32, #tpu.memory_space<vmem>>, vector<8x32xf32>
    %c0_44 = arith.constant 0 : index
    %c0_45 = arith.constant 0 : index
    %67 = vector.load %arg5[%c0_44, %c0_45] : memref<32x32xf32, #tpu.memory_space<vmem>>, vector<32x32xf32>
    %cst_46 = arith.constant dense<0.000000e+00> : vector<8x32xf32>
    %68 = tpu.matmul %66, %67, %cst_46 {dimension_numbers = #tpu.dot_dimension_numbers<[1], [0], [0], [1], [0, 0, 1, 1], [], []>, precision = #tpu.contract_precision<fp32>} : vector<8x32xf32>, vector<32x32xf32>, vector<8x32xf32> -> vector<8x32xf32>
    %c0_47 = arith.constant 0 : index
    %c0_48 = arith.constant 0 : index
    %69 = vector.load %arg6[%c0_47, %c0_48] : memref<1x32xf32, #tpu.memory_space<vmem>>, vector<1x32xf32>
    %70 = vector.broadcast %69 : vector<1x32xf32> to vector<8x32xf32>
    %71 = arith.addf %68, %70 : vector<8x32xf32>
    %cst_49 = arith.constant 5.000000e-01 : f32
    %72 = vector.broadcast %cst_49 : f32 to vector<8x32xf32>
    %73 = arith.mulf %72, %71 : vector<8x32xf32>
    %cst_50 = arith.constant 0.707106769 : f32
    %74 = vector.broadcast %cst_50 : f32 to vector<8x32xf32>
    %75 = arith.mulf %71, %74 : vector<8x32xf32>
    %76 = math.erf %75 : vector<8x32xf32>
    %cst_51 = arith.constant 1.000000e+00 : f32
    %77 = vector.broadcast %cst_51 : f32 to vector<8x32xf32>
    %78 = arith.addf %77, %76 : vector<8x32xf32>
    %79 = arith.mulf %73, %78 : vector<8x32xf32>
    %c0_52 = arith.constant 0 : index
    %c0_53 = arith.constant 0 : index
    %80 = vector.load %arg7[%c0_52, %c0_53] : memref<32x128xf32, #tpu.memory_space<vmem>>, vector<32x128xf32>
    %cst_54 = arith.constant dense<0.000000e+00> : vector<8x128xf32>
    %81 = tpu.matmul %79, %80, %cst_54 {dimension_numbers = #tpu.dot_dimension_numbers<[1], [0], [0], [1], [0, 0, 1, 1], [], []>, precision = #tpu.contract_precision<fp32>} : vector<8x32xf32>, vector<32x128xf32>, vector<8x128xf32> -> vector<8x128xf32>
    %c0_55 = arith.constant 0 : index
    %c0_56 = arith.constant 0 : index
    %82 = vector.load %arg8[%c0_55, %c0_56] : memref<1x128xf32, #tpu.memory_space<vmem>>, vector<1x128xf32>
    %83 = vector.broadcast %82 : vector<1x128xf32> to vector<8x128xf32>
    %84 = arith.addf %81, %83 : vector<8x128xf32>
    %c0_57 = arith.constant 0 : index
    %c0_58 = arith.constant 0 : index
    %85 = vector.load %arg9[%c0_57, %c0_58] : memref<8x128xf32, #tpu.memory_space<vmem>>, vector<8x128xf32>
    tpu.vector_store %arg9[%c0_57, %c0_58], %84 {strides = array<i32>} : memref<8x128xf32, #tpu.memory_space<vmem>>, vector<8x128xf32>,
    return
  }
  func.func @transform_0(%arg0: i32, %arg1: memref<8xi32, #tpu.memory_space<smem>>, %arg2: memref<8xi32, #tpu.memory_space<smem>>) -> (i32, i32) {
    %c0_i32 = arith.constant 0 : i32
    %c0_i32_0 = arith.constant 0 : i32
    %c0_i32_1 = arith.constant 0 : i32
    return %c0_i32, %c0_i32_0 : i32, i32
  }
  func.func @transform_1(%arg0: i32, %arg1: memref<8xi32, #tpu.memory_space<smem>>, %arg2: memref<8xi32, #tpu.memory_space<smem>>) -> (i32, i32) {
    %c0_i32 = arith.constant 0 : i32
    %c0_i32_0 = arith.constant 0 : i32
    %c0_i32_1 = arith.constant 0 : i32
    return %c0_i32, %c0_i32_0 : i32, i32
  }
  func.func @transform_2(%arg0: i32, %arg1: memref<8xi32, #tpu.memory_space<smem>>, %arg2: memref<8xi32, #tpu.memory_space<smem>>) -> (i32, i32) {
    %c0_i32 = arith.constant 0 : i32
    %c0_i32_0 = arith.constant 0 : i32
    %c0_i32_1 = arith.constant 0 : i32
    return %c0_i32, %c0_i32_0 : i32, i32
  }
  func.func @transform_3(%arg0: i32, %arg1: memref<8xi32, #tpu.memory_space<smem>>, %arg2: memref<8xi32, #tpu.memory_space<smem>>) -> (i32, i32) {
    %c0_i32 = arith.constant 0 : i32
    %c0_i32_0 = arith.constant 0 : i32
    %c0_i32_1 = arith.constant 0 : i32
    return %c0_i32, %c0_i32_0 : i32, i32
  }
  func.func @transform_4(%arg0: i32, %arg1: memref<8xi32, #tpu.memory_space<smem>>, %arg2: memref<8xi32, #tpu.memory_space<smem>>) -> (i32, i32) {
    %c0_i32 = arith.constant 0 : i32
    %c0_i32_0 = arith.constant 0 : i32
    %c0_i32_1 = arith.constant 0 : i32
    return %c0_i32, %c0_i32_0 : i32, i32
  }
  func.func @transform_5(%arg0: i32, %arg1: memref<8xi32, #tpu.memory_space<smem>>, %arg2: memref<8xi32, #tpu.memory_space<smem>>) -> (i32, i32) {
    %c0_i32 = arith.constant 0 : i32
    %c0_i32_0 = arith.constant 0 : i32
    %c0_i32_1 = arith.constant 0 : i32
    return %c0_i32, %c0_i32_0 : i32, i32
  }
  func.func @transform_6(%arg0: i32, %arg1: memref<8xi32, #tpu.memory_space<smem>>, %arg2: memref<8xi32, #tpu.memory_space<smem>>) -> (i32, i32) {
    %c0_i32 = arith.constant 0 : i32
    %c0_i32_0 = arith.constant 0 : i32
    %c0_i32_1 = arith.constant 0 : i32
    return %c0_i32, %c0_i32_0 : i32, i32
  }
}

</mosaic_0001>

<llo_original>
// kernel: tpu_custom_call.1
$region0: #{tpu_custom_call.1}
  #allocation0 [shape = 'u32[]', space=smem, size = 0x4, offset = 0x4, fixed_abs, tag = 'smem constant byte address 0x4 - core index']
  #allocation1 [shape = 'u32[72,128]{1,0:T(1,128)}', space=vmem, size = 0x9000, scoped, tag = 'internal scratch']
  #allocation2 [shape = 'f32[8,32]{1,0:T(8,128)}', space=vmem, size = 0x1000, scoped, tag = 'scratch operand']
  #allocation3 [shape = 's32[1]{0}', space=sflag, size = 0x4, scoped, tag = 'scoped memory for tpu_custom_call.1']
  #allocation4 [shape = 'u8[512]{0}', space=smem, size = 0x200, scoped, tag = 'prefetched SMEM operand 0']
  #allocation5 [shape = 'u8[512]{0}', space=smem, size = 0x200, scoped, tag = 'prefetched SMEM operand 1']
  %s0 = inlined_call_operand.vmem [shape: s32[8], index: 0, kind: input, shape index: {}]
  %s1 = inlined_call_operand.vmem [shape: s32[8], index: 1, kind: input, shape index: {}]
  %s2 = inlined_call_operand.vmem [shape: f32[64,32], index: 2, kind: input, shape index: {}]
  %s3 = inlined_call_operand.vmem [shape: f32[64,32], index: 3, kind: input, shape index: {}]
  %s4 = inlined_call_operand.vmem [shape: f32[32,32], index: 4, kind: input, shape index: {}]
  %s5 = inlined_call_operand.vmem [shape: f32[1,32], index: 5, kind: input, shape index: {}]
  %s6 = inlined_call_operand.vmem [shape: f32[32,128], index: 6, kind: input, shape index: {}]
  %s7 = inlined_call_operand.vmem [shape: f32[1,128], index: 7, kind: input, shape index: {}]
  %s8 = inlined_call_operand.hbm [shape: f32[8,128], index: 8, kind: output, shape index: {}]
  %s9 = sld [smem:[#allocation0]]
  $region34: #{tpu_custom_call.1} parent=0
    _
  %s11 = ssub.s32 1, %s9
  %s12 = scalar_select 0, %s11, %s9
  %s14 = sshll.u32 %s0, 4
  %s15 = int_to_ptr.vmem [resolvable:$true] %s14
  %17 = dma.vmem_to_smem %s15, 16, [#allocation4], [#allocation3]
  %s19 = sshll.u32 %s1, 4
  %s20 = int_to_ptr.vmem [resolvable:$true] %s19
  %22 = dma.vmem_to_smem %s20, 16, [#allocation5], [#allocation3]
  %24 = dma.done [#allocation3], 32
  %25 = sfence
  $region1: #{tpu_custom_call.1} parent=0
    #allocation6 [shape = 'u8[4096]{0}', space=vmem, size = 0x1000, scoped, tag = 'output window, operand 0, single buffered']
    #allocation7 [shape = 's32[1]{0}', space=sflag, size = 0x4, scoped, tag = 'scoped memory for tpu_custom_call.1']
    %26 = vsyncpa [#allocation7], 0
    // Predicated region
    $region2: #{tpu_custom_call.1} parent=1 // pred_check
      _
    $region3: #{tpu_custom_call.1} parent=1 // pred_check_branch
      %28 = sbr.rel (0) target = $region5
    $region4: #{tpu_custom_call.1} parent=1 // pred_region
      _
    $region5: #{tpu_custom_call.1} parent=1 // pred_fallthru
      _
    // Predicated region
    $region6: #{tpu_custom_call.1} parent=1 // pred_check
      _
    $region7: #{tpu_custom_call.1} parent=1 // pred_check_branch
      %30 = sbr.rel (0) target = $region9
    $region8: #{tpu_custom_call.1} parent=1 // pred_region
      _
    $region9: #{tpu_custom_call.1} parent=1 // pred_fallthru
      _
    // Predicated region
    $region10: #{tpu_custom_call.1} parent=1 // pred_check
      _
    $region11: #{tpu_custom_call.1} parent=1 // pred_check_branch
      %32 = sbr.rel (0) target = $region13
    $region12: #{tpu_custom_call.1} parent=1 // pred_region
      _
    $region13: #{tpu_custom_call.1} parent=1 // pred_fallthru
      _
    // Predicated region
    $region14: #{tpu_custom_call.1} parent=1 // pred_check
      _
    $region15: #{tpu_custom_call.1} parent=1 // pred_check_branch
      %34 = sbr.rel (0) target = $region17
    $region16: #{tpu_custom_call.1} parent=1 // pred_region
      _
    $region17: #{tpu_custom_call.1} parent=1 // pred_fallthru
      _
    // Predicated region
    $region18: #{tpu_custom_call.1} parent=1 // pred_check
      _
    $region19: #{tpu_custom_call.1} parent=1 // pred_check_branch
      %36 = sbr.rel (0) target = $region21
    $region20: #{tpu_custom_call.1} parent=1 // pred_region
      _
    $region21: #{tpu_custom_call.1} parent=1 // pred_fallthru
      _
    // Predicated region
    $region22: #{tpu_custom_call.1} parent=1 // pred_check
      _
    $region23: #{tpu_custom_call.1} parent=1 // pred_check_branch
      %38 = sbr.rel (0) target = $region25
    $region24: #{tpu_custom_call.1} parent=1 // pred_region
      _
    $region25: #{tpu_custom_call.1} parent=1 // pred_fallthru
      _
    %vm39 = vcmask 261120
    %40 = vst.msk [vmem:[#allocation2] sm:$0xff] %vm39, 0.0
    %s41 = sld [smem:[#allocation4]]
    %s42 = scalar_lea.vmem %s2, %s41
    %v43 = vld [vmem:[%s42] sm:$0x1]
    %s44 = sld [smem:[#allocation5]]
    %s45 = scalar_lea.vmem %s3, %s44
    %v46 = vld [vmem:[%s45] sm:$0x1]
    %v47 = vadd.f32 %v43, %v46
    %vm48 = vcmask 253952
    %49 = vst.msk [vmem:[#allocation2] sm:$0x1] %vm48, %v47
    %s50 = sld [smem:[#allocation4 + $0x1]]
    %s51 = scalar_lea.vmem %s2, %s50
    %v52 = vld [vmem:[%s51] sm:$0x1]
    %s53 = sld [smem:[#allocation5 + $0x1]]
    %s54 = scalar_lea.vmem %s3, %s53
    %v55 = vld [vmem:[%s54] sm:$0x1]
    %v56 = vadd.f32 %v52, %v55
    %57 = vst.msk [vmem:[#allocation2 + $0x1] sm:$0x1] %vm48, %v56
    %s58 = sld [smem:[#allocation4 + $0x2]]
    %s59 = scalar_lea.vmem %s2, %s58
    %v60 = vld [vmem:[%s59] sm:$0x1]
    %s61 = sld [smem:[#allocation5 + $0x2]]
    %s62 = scalar_lea.vmem %s3, %s61
    %v63 = vld [vmem:[%s62] sm:$0x1]
    %v64 = vadd.f32 %v60, %v63
    %65 = vst.msk [vmem:[#allocation2 + $0x2] sm:$0x1] %vm48, %v64
    %s66 = sld [smem:[#allocation4 + $0x3]]
    %s67 = scalar_lea.vmem %s2, %s66
    %v68 = vld [vmem:[%s67] sm:$0x1]
    %s69 = sld [smem:[#allocation5 + $0x3]]
    %s70 = scalar_lea.vmem %s3, %s69
    %v71 = vld [vmem:[%s70] sm:$0x1]
    %v72 = vadd.f32 %v68, %v71
    %73 = vst.msk [vmem:[#allocation2 + $0x3] sm:$0x1] %vm48, %v72
    %s74 = sld [smem:[#allocation4 + $0x4]]
    %s75 = scalar_lea.vmem %s2, %s74
    %v76 = vld [vmem:[%s75] sm:$0x1]
    %s77 = sld [smem:[#allocation5 + $0x4]]
    %s78 = scalar_lea.vmem %s3, %s77
    %v79 = vld [vmem:[%s78] sm:$0x1]
    %v80 = vadd.f32 %v76, %v79
    %81 = vst.msk [vmem:[#allocation2 + $0x4] sm:$0x1] %vm48, %v80
    %s82 = sld [smem:[#allocation4 + $0x5]]
    %s83 = scalar_lea.vmem %s2, %s82
    %v84 = vld [vmem:[%s83] sm:$0x1]
    %s85 = sld [smem:[#allocation5 + $0x5]]
    %s86 = scalar_lea.vmem %s3, %s85
    %v87 = vld [vmem:[%s86] sm:$0x1]
    %v88 = vadd.f32 %v84, %v87
    %89 = vst.msk [vmem:[#allocation2 + $0x5] sm:$0x1] %vm48, %v88
    %s90 = sld [smem:[#allocation4 + $0x6]]
    %s91 = scalar_lea.vmem %s2, %s90
    %v92 = vld [vmem:[%s91] sm:$0x1]
    %s93 = sld [smem:[#allocation5 + $0x6]]
    %s94 = scalar_lea.vmem %s3, %s93
    %v95 = vld [vmem:[%s94] sm:$0x1]
    %v96 = vadd.f32 %v92, %v95
    %97 = vst.msk [vmem:[#allocation2 + $0x6] sm:$0x1] %vm48, %v96
    %s98 = sld [smem:[#allocation4 + $0x7]]
    %s99 = scalar_lea.vmem %s2, %s98
    %v100 = vld [vmem:[%s99] sm:$0x1]
    %s101 = sld [smem:[#allocation5 + $0x7]]
    %s102 = scalar_lea.vmem %s3, %s101
    %v103 = vld [vmem:[%s102] sm:$0x1]
    %v104 = vadd.f32 %v100, %v103
    %105 = vst.msk [vmem:[#allocation2 + $0x7] sm:$0x1] %vm48, %v104
    %v106 = vld [vmem:[#allocation2] sm:$0xff]
    %v107 = vld [vmem:[%s4] sm:$0xff]
    %v108 = vld [vmem:[%s4 + $0x8] sm:$0xff]
    %v109 = vld [vmem:[%s4 + $0x10] sm:$0xff]
    %v110 = vld [vmem:[%s4 + $0x18] sm:$0xff]
    %v111 = vld [vmem:[%s5] sm:$0x1]
    %v113 = vperm.slane %v111, 0
    %v116 = vsel %vm39, %v106, 0
    %118 = vmatpush.msra.mxu0 0.0
    %119 = vmatpush.msra.mxu0 0.0
    %120 = vmatpush.msra.mxu0 0.0
    %121 = vmatpush.msra.mxu0 0.0
    %122 = vmatpush.msra.mxu0 0.0
    %123 = vmatpush.msra.mxu0 0.0
    %124 = vmatpush.msra.mxu0 0.0
    %125 = vmatpush.msra.mxu0 0.0
    %126 = vmatpush.msra.mxu0 0.0
    %127 = vmatpush.msra.mxu0 0.0
    %128 = vmatpush.msra.mxu0 0.0
    %129 = vmatpush.msra.mxu0 0.0
    %v130 = vand.u32 %v110, 4294901760
    %131 = vmatpush.msra.mxu0 %v130
    %v132 = vand.u32 %v109, 4294901760
    %133 = vmatpush.msra.mxu0 %v132
    %v134 = vand.u32 %v108, 4294901760
    %135 = vmatpush.msra.mxu0 %v134
    %v136 = vand.u32 %v107, 4294901760
    %137 = vmatpush.msra.mxu0 %v136
    %v138 = vand.u32 %v116, 4294901760
    %v139 = vsub.f32 %v116, %v138
    %v140 = vand.u32 %v139, 4294901760
    %v141 = vsub.f32 %v139, %v140
    %v142 = vand.u32 %v141, 4294901760
    %143 = vmatmul.f32.gmra.mxu0 %v142
    %v144 = vpop.f32.mrf.mxu0
    %v145 = vadd.f32 %v113, %v144
    %146 = vdwg.mxu0
    %147 = vmatpush.msra.mxu0 0.0
    %148 = vmatpush.msra.mxu0 0.0
    %149 = vmatpush.msra.mxu0 0.0
    %150 = vmatpush.msra.mxu0 0.0
    %151 = vmatpush.msra.mxu0 0.0
    %152 = vmatpush.msra.mxu0 0.0
    %153 = vmatpush.msra.mxu0 0.0
    %154 = vmatpush.msra.mxu0 0.0
    %155 = vmatpush.msra.mxu0 0.0
    %156 = vmatpush.msra.mxu0 0.0
    %157 = vmatpush.msra.mxu0 0.0
    %158 = vmatpush.msra.mxu0 0.0
    %v159 = vand.u32 %v110, 4294901760
    %v160 = vsub.f32 %v110, %v159
    %v161 = vand.u32 %v160, 4294901760
    %v162 = vsub.f32 %v160, %v161
    %v163 = vand.u32 %v162, 4294901760
    %164 = vmatpush.msra.mxu0 %v163
    %v165 = vand.u32 %v109, 4294901760
    %v166 = vsub.f32 %v109, %v165
    %v167 = vand.u32 %v166, 4294901760
    %v168 = vsub.f32 %v166, %v167
    %v169 = vand.u32 %v168, 4294901760
    %170 = vmatpush.msra.mxu0 %v169
    %v171 = vand.u32 %v108, 4294901760
    %v172 = vsub.f32 %v108, %v171
    %v173 = vand.u32 %v172, 4294901760
    %v174 = vsub.f32 %v172, %v173
    %v175 = vand.u32 %v174, 4294901760
    %176 = vmatpush.msra.mxu0 %v175
    %v177 = vand.u32 %v107, 4294901760
    %v178 = vsub.f32 %v107, %v177
    %v179 = vand.u32 %v178, 4294901760
    %v180 = vsub.f32 %v178, %v179
    %v181 = vand.u32 %v180, 4294901760
    %182 = vmatpush.msra.mxu0 %v181
    %v183 = vand.u32 %v116, 4294901760
    %184 = vmatmul.f32.gmra.mxu0 %v183
    %v185 = vpop.f32.mrf.mxu0
    %v186 = vadd.f32 %v145, %v185
    %187 = vdwg.mxu0
    %188 = vmatpush.msra.mxu0 0.0
    %189 = vmatpush.msra.mxu0 0.0
    %190 = vmatpush.msra.mxu0 0.0
    %191 = vmatpush.msra.mxu0 0.0
    %192 = vmatpush.msra.mxu0 0.0
    %193 = vmatpush.msra.mxu0 0.0
    %194 = vmatpush.msra.mxu0 0.0
    %195 = vmatpush.msra.mxu0 0.0
    %196 = vmatpush.msra.mxu0 0.0
    %197 = vmatpush.msra.mxu0 0.0
    %198 = vmatpush.msra.mxu0 0.0
    %199 = vmatpush.msra.mxu0 0.0
    %v200 = vand.u32 %v110, 4294901760
    %v201 = vsub.f32 %v110, %v200
    %202 = vmatpush.msra.mxu0 %v201
    %v203 = vand.u32 %v109, 4294901760
    %v204 = vsub.f32 %v109, %v203
    %205 = vmatpush.msra.mxu0 %v204
    %v206 = vand.u32 %v108, 4294901760
    %v207 = vsub.f32 %v108, %v206
    %208 = vmatpush.msra.mxu0 %v207
    %v209 = vand.u32 %v107, 4294901760
    %v210 = vsub.f32 %v107, %v209
    %211 = vmatpush.msra.mxu0 %v210
    %v212 = vand.u32 %v116, 4294901760
    %v213 = vsub.f32 %v116, %v212
    %214 = vmatmul.f32.gmra.mxu0 %v213
    %v215 = vpop.f32.mrf.mxu0
    %v216 = vadd.f32 %v186, %v215
    %217 = vdwg.mxu0
    %218 = vmatpush.msra.mxu0 0.0
    %219 = vmatpush.msra.mxu0 0.0
    %220 = vmatpush.msra.mxu0 0.0
    %221 = vmatpush.msra.mxu0 0.0
    %222 = vmatpush.msra.mxu0 0.0
    %223 = vmatpush.msra.mxu0 0.0
    %224 = vmatpush.msra.mxu0 0.0
    %225 = vmatpush.msra.mxu0 0.0
    %226 = vmatpush.msra.mxu0 0.0
    %227 = vmatpush.msra.mxu0 0.0
    %228 = vmatpush.msra.mxu0 0.0
    %229 = vmatpush.msra.mxu0 0.0
    %v230 = vand.u32 %v110, 4294901760
    %231 = vmatpush.msra.mxu0 %v230
    %v232 = vand.u32 %v109, 4294901760
    %233 = vmatpush.msra.mxu0 %v232
    %v234 = vand.u32 %v108, 4294901760
    %235 = vmatpush.msra.mxu0 %v234
    %v236 = vand.u32 %v107, 4294901760
    %237 = vmatpush.msra.mxu0 %v236
    %v238 = vand.u32 %v116, 4294901760
    %v239 = vsub.f32 %v116, %v238
    %v240 = vand.u32 %v239, 4294901760
    %241 = vmatmul.f32.gmra.mxu0 %v240
    %v242 = vpop.f32.mrf.mxu0
    %v243 = vadd.f32 %v216, %v242
    %244 = vdwg.mxu0
    %245 = vmatpush.msra.mxu0 0.0
    %246 = vmatpush.msra.mxu0 0.0
    %247 = vmatpush.msra.mxu0 0.0
    %248 = vmatpush.msra.mxu0 0.0
    %249 = vmatpush.msra.mxu0 0.0
    %250 = vmatpush.msra.mxu0 0.0
    %251 = vmatpush.msra.mxu0 0.0
    %252 = vmatpush.msra.mxu0 0.0
    %253 = vmatpush.msra.mxu0 0.0
    %254 = vmatpush.msra.mxu0 0.0
    %255 = vmatpush.msra.mxu0 0.0
    %256 = vmatpush.msra.mxu0 0.0
    %v257 = vand.u32 %v110, 4294901760
    %v258 = vsub.f32 %v110, %v257
    %v259 = vand.u32 %v258, 4294901760
    %260 = vmatpush.msra.mxu0 %v259
    %v261 = vand.u32 %v109, 4294901760
    %v262 = vsub.f32 %v109, %v261
    %v263 = vand.u32 %v262, 4294901760
    %264 = vmatpush.msra.mxu0 %v263
    %v265 = vand.u32 %v108, 4294901760
    %v266 = vsub.f32 %v108, %v265
    %v267 = vand.u32 %v266, 4294901760
    %268 = vmatpush.msra.mxu0 %v267
    %v269 = vand.u32 %v107, 4294901760
    %v270 = vsub.f32 %v107, %v269
    %v271 = vand.u32 %v270, 4294901760
    %272 = vmatpush.msra.mxu0 %v271
    %v273 = vand.u32 %v116, 4294901760
    %274 = vmatmul.f32.gmra.mxu0 %v273
    %v275 = vpop.f32.mrf.mxu0
    %v276 = vadd.f32 %v243, %v275
    %277 = vdwg.mxu0
    %278 = vmatpush.msra.mxu0 0.0
    %279 = vmatpush.msra.mxu0 0.0
    %280 = vmatpush.msra.mxu0 0.0
    %281 = vmatpush.msra.mxu0 0.0
    %282 = vmatpush.msra.mxu0 0.0
    %283 = vmatpush.msra.mxu0 0.0
    %284 = vmatpush.msra.mxu0 0.0
    %285 = vmatpush.msra.mxu0 0.0
    %286 = vmatpush.msra.mxu0 0.0
    %287 = vmatpush.msra.mxu0 0.0
    %288 = vmatpush.msra.mxu0 0.0
    %289 = vmatpush.msra.mxu0 0.0
    %v290 = vand.u32 %v110, 4294901760
    %291 = vmatpush.msra.mxu0 %v290
    %v292 = vand.u32 %v109, 4294901760
    %293 = vmatpush.msra.mxu0 %v292
    %v294 = vand.u32 %v108, 4294901760
    %295 = vmatpush.msra.mxu0 %v294
    %v296 = vand.u32 %v107, 4294901760
    %297 = vmatpush.msra.mxu0 %v296
    %v298 = vand.u32 %v116, 4294901760
    %299 = vmatmul.f32.gmra.mxu0 %v298
    %v300 = vpop.f32.mrf.mxu0
    %v301 = vadd.f32 %v276, %v300
    %302 = vdwg.mxu0
    %v303 = vmul.f32 %v301, 0.5
    %v304 = vmul.f32 %v301, 0.70710677
    %v305 = vmul.f32 %v304, %v304
    %v306 = vmin.f32 16.0, %v305
    %v307 = vmul.f32 %v306, 2.1237322e-06
    %v308 = vadd.f32 %v307, 0.00028619796
    %v309 = vmul.f32 %v306, %v308
    %v310 = vadd.f32 %v309, 0.0036580483
    %v311 = vmul.f32 %v306, %v310
    %v312 = vadd.f32 %v311, 0.05243302
    %v313 = vmul.f32 %v306, %v312
    %v314 = vadd.f32 %v313, 0.18741608
    %v315 = vmul.f32 %v306, %v314
    %v316 = vadd.f32 %v315, 1.1283791
    %v317 = vmul.f32 %v304, %v316
    %v318 = vmul.f32 %v306, 3.8918573e-05
    %v319 = vadd.f32 %v318, 0.001143296
    %v320 = vmul.f32 %v306, %v319
    %v321 = vadd.f32 %v320, 0.014752088
    %v322 = vmul.f32 %v306, %v321
    %v323 = vadd.f32 %v322, 0.112945676
    %v324 = vmul.f32 %v306, %v323
    %v325 = vadd.f32 %v324, 0.4994258
    %v326 = vmul.f32 %v306, %v325
    %v327 = vadd.f32 %v326, 1.0
    %v328 = vrcp.pop %v327
    %v329 = vmul.f32 %v327, %v328
    %v330 = vsub.f32 1.0, %v329
    %v331 = vmul.f32 %v328, %v330
    %v332 = vadd.f32 %v328, %v331
    %vm333 = vweird.f32 %v327
    %vm334 = vweird.f32 %v328
    %vm335 = vmor %vm333, %vm334
    %v336 = vsel %vm335, %v328, %v332
    %v337 = vand.u32 2147483647, %v327
    %vm338 = vcmp.eq.f32.partialorder %v337, 8.507059e+37
    %v339 = vand.u32 %v327, 2147483648
    %v340 = vor.u32 1.1754944e-38, %v339
    %v341 = vsel %vm338, %v340, %v336
    %v342 = vmul.f32 %v317, %v341
    %v343 = vmin.f32 %v342, 1.0
    %v344 = vmax.f32 %v343, -1.0
    %v345 = vadd.f32 %v344, 1.0
    %v346 = vmul.f32 %v303, %v345
    %v347 = vld [vmem:[%s6] sm:$0xff]
    %v348 = vld [vmem:[%s6 + $0x8] sm:$0xff]
    %v349 = vld [vmem:[%s6 + $0x10] sm:$0xff]
    %v350 = vld [vmem:[%s6 + $0x18] sm:$0xff]
    %v351 = vld [vmem:[%s7] sm:$0x1]
    %v353 = vperm.slane %v351, 0
    %v356 = vsel %vm39, %v346, 0
    %358 = vmatpush.msra.mxu0 0.0
    %359 = vmatpush.msra.mxu0 0.0
    %360 = vmatpush.msra.mxu0 0.0
    %361 = vmatpush.msra.mxu0 0.0
    %362 = vmatpush.msra.mxu0 0.0
    %363 = vmatpush.msra.mxu0 0.0
    %364 = vmatpush.msra.mxu0 0.0
    %365 = vmatpush.msra.mxu0 0.0
    %366 = vmatpush.msra.mxu0 0.0
    %367 = vmatpush.msra.mxu0 0.0
    %368 = vmatpush.msra.mxu0 0.0
    %369 = vmatpush.msra.mxu0 0.0
    %v370 = vand.u32 %v350, 4294901760
    %371 = vmatpush.msra.mxu0 %v370
    %v372 = vand.u32 %v349, 4294901760
    %373 = vmatpush.msra.mxu0 %v372
    %v374 = vand.u32 %v348, 4294901760
    %375 = vmatpush.msra.mxu0 %v374
    %v376 = vand.u32 %v347, 4294901760
    %377 = vmatpush.msra.mxu0 %v376
    %v378 = vand.u32 %v356, 4294901760
    %v379 = vsub.f32 %v356, %v378
    %v380 = vand.u32 %v379, 4294901760
    %v381 = vsub.f32 %v379, %v380
    %v382 = vand.u32 %v381, 4294901760
    %383 = vmatmul.f32.gmra.mxu0 %v382
    %v384 = vpop.f32.mrf.mxu0
    %v385 = vadd.f32 %v353, %v384
    %386 = vdwg.mxu0
    %387 = vmatpush.msra.mxu0 0.0
    %388 = vmatpush.msra.mxu0 0.0
    %389 = vmatpush.msra.mxu0 0.0
    %390 = vmatpush.msra.mxu0 0.0
    %391 = vmatpush.msra.mxu0 0.0
    %392 = vmatpush.msra.mxu0 0.0
    %393 = vmatpush.msra.mxu0 0.0
    %394 = vmatpush.msra.mxu0 0.0
    %395 = vmatpush.msra.mxu0 0.0
    %396 = vmatpush.msra.mxu0 0.0
    %397 = vmatpush.msra.mxu0 0.0
    %398 = vmatpush.msra.mxu0 0.0
    %v399 = vand.u32 %v350, 4294901760
    %v400 = vsub.f32 %v350, %v399
    %v401 = vand.u32 %v400, 4294901760
    %v402 = vsub.f32 %v400, %v401
    %v403 = vand.u32 %v402, 4294901760
    %404 = vmatpush.msra.mxu0 %v403
    %v405 = vand.u32 %v349, 4294901760
    %v406 = vsub.f32 %v349, %v405
    %v407 = vand.u32 %v406, 4294901760
    %v408 = vsub.f32 %v406, %v407
    %v409 = vand.u32 %v408, 4294901760
    %410 = vmatpush.msra.mxu0 %v409
    %v411 = vand.u32 %v348, 4294901760
    %v412 = vsub.f32 %v348, %v411
    %v413 = vand.u32 %v412, 4294901760
    %v414 = vsub.f32 %v412, %v413
    %v415 = vand.u32 %v414, 4294901760
    %416 = vmatpush.msra.mxu0 %v415
    %v417 = vand.u32 %v347, 4294901760
    %v418 = vsub.f32 %v347, %v417
    %v419 = vand.u32 %v418, 4294901760
    %v420 = vsub.f32 %v418, %v419
    %v421 = vand.u32 %v420, 4294901760
    %422 = vmatpush.msra.mxu0 %v421
    %v423 = vand.u32 %v356, 4294901760
    %424 = vmatmul.f32.gmra.mxu0 %v423
    %v425 = vpop.f32.mrf.mxu0
    %v426 = vadd.f32 %v385, %v425
    %427 = vdwg.mxu0
    %428 = vmatpush.msra.mxu0 0.0
    %429 = vmatpush.msra.mxu0 0.0
    %430 = vmatpush.msra.mxu0 0.0
    %431 = vmatpush.msra.mxu0 0.0
    %432 = vmatpush.msra.mxu0 0.0
    %433 = vmatpush.msra.mxu0 0.0
    %434 = vmatpush.msra.mxu0 0.0
    %435 = vmatpush.msra.mxu0 0.0
    %436 = vmatpush.msra.mxu0 0.0
    %437 = vmatpush.msra.mxu0 0.0
    %438 = vmatpush.msra.mxu0 0.0
    %439 = vmatpush.msra.mxu0 0.0
    %v440 = vand.u32 %v350, 4294901760
    %v441 = vsub.f32 %v350, %v440
    %442 = vmatpush.msra.mxu0 %v441
    %v443 = vand.u32 %v349, 4294901760
    %v444 = vsub.f32 %v349, %v443
    %445 = vmatpush.msra.mxu0 %v444
    %v446 = vand.u32 %v348, 4294901760
    %v447 = vsub.f32 %v348, %v446
    %448 = vmatpush.msra.mxu0 %v447
    %v449 = vand.u32 %v347, 4294901760
    %v450 = vsub.f32 %v347, %v449
    %451 = vmatpush.msra.mxu0 %v450
    %v452 = vand.u32 %v356, 4294901760
    %v453 = vsub.f32 %v356, %v452
    %454 = vmatmul.f32.gmra.mxu0 %v453
    %v455 = vpop.f32.mrf.mxu0
    %v456 = vadd.f32 %v426, %v455
    %457 = vdwg.mxu0
    %458 = vmatpush.msra.mxu0 0.0
    %459 = vmatpush.msra.mxu0 0.0
    %460 = vmatpush.msra.mxu0 0.0
    %461 = vmatpush.msra.mxu0 0.0
    %462 = vmatpush.msra.mxu0 0.0
    %463 = vmatpush.msra.mxu0 0.0
    %464 = vmatpush.msra.mxu0 0.0
    %465 = vmatpush.msra.mxu0 0.0
    %466 = vmatpush.msra.mxu0 0.0
    %467 = vmatpush.msra.mxu0 0.0
    %468 = vmatpush.msra.mxu0 0.0
    %469 = vmatpush.msra.mxu0 0.0
    %v470 = vand.u32 %v350, 4294901760
    %471 = vmatpush.msra.mxu0 %v470
    %v472 = vand.u32 %v349, 4294901760
    %473 = vmatpush.msra.mxu0 %v472
    %v474 = vand.u32 %v348, 4294901760
    %475 = vmatpush.msra.mxu0 %v474
    %v476 = vand.u32 %v347, 4294901760
    %477 = vmatpush.msra.mxu0 %v476
    %v478 = vand.u32 %v356, 4294901760
    %v479 = vsub.f32 %v356, %v478
    %v480 = vand.u32 %v479, 4294901760
    %481 = vmatmul.f32.gmra.mxu0 %v480
    %v482 = vpop.f32.mrf.mxu0
    %v483 = vadd.f32 %v456, %v482
    %484 = vdwg.mxu0
    %485 = vmatpush.msra.mxu0 0.0
    %486 = vmatpush.msra.mxu0 0.0
    %487 = vmatpush.msra.mxu0 0.0
    %488 = vmatpush.msra.mxu0 0.0
    %489 = vmatpush.msra.mxu0 0.0
    %490 = vmatpush.msra.mxu0 0.0
    %491 = vmatpush.msra.mxu0 0.0
    %492 = vmatpush.msra.mxu0 0.0
    %493 = vmatpush.msra.mxu0 0.0
    %494 = vmatpush.msra.mxu0 0.0
    %495 = vmatpush.msra.mxu0 0.0
    %496 = vmatpush.msra.mxu0 0.0
    %v497 = vand.u32 %v350, 4294901760
    %v498 = vsub.f32 %v350, %v497
    %v499 = vand.u32 %v498, 4294901760
    %500 = vmatpush.msra.mxu0 %v499
    %v501 = vand.u32 %v349, 4294901760
    %v502 = vsub.f32 %v349, %v501
    %v503 = vand.u32 %v502, 4294901760
    %504 = vmatpush.msra.mxu0 %v503
    %v505 = vand.u32 %v348, 4294901760
    %v506 = vsub.f32 %v348, %v505
    %v507 = vand.u32 %v506, 4294901760
    %508 = vmatpush.msra.mxu0 %v507
    %v509 = vand.u32 %v347, 4294901760
    %v510 = vsub.f32 %v347, %v509
    %v511 = vand.u32 %v510, 4294901760
    %512 = vmatpush.msra.mxu0 %v511
    %v513 = vand.u32 %v356, 4294901760
    %514 = vmatmul.f32.gmra.mxu0 %v513
    %v515 = vpop.f32.mrf.mxu0
    %v516 = vadd.f32 %v483, %v515
    %517 = vdwg.mxu0
    %518 = vmatpush.msra.mxu0 0.0
    %519 = vmatpush.msra.mxu0 0.0
    %520 = vmatpush.msra.mxu0 0.0
    %521 = vmatpush.msra.mxu0 0.0
    %522 = vmatpush.msra.mxu0 0.0
    %523 = vmatpush.msra.mxu0 0.0
    %524 = vmatpush.msra.mxu0 0.0
    %525 = vmatpush.msra.mxu0 0.0
    %526 = vmatpush.msra.mxu0 0.0
    %527 = vmatpush.msra.mxu0 0.0
    %528 = vmatpush.msra.mxu0 0.0
    %529 = vmatpush.msra.mxu0 0.0
    %v530 = vand.u32 %v350, 4294901760
    %531 = vmatpush.msra.mxu0 %v530
    %v532 = vand.u32 %v349, 4294901760
    %533 = vmatpush.msra.mxu0 %v532
    %v534 = vand.u32 %v348, 4294901760
    %535 = vmatpush.msra.mxu0 %v534
    %v536 = vand.u32 %v347, 4294901760
    %537 = vmatpush.msra.mxu0 %v536
    %v538 = vand.u32 %v356, 4294901760
    %539 = vmatmul.f32.gmra.mxu0 %v538
    %v540 = vpop.f32.mrf.mxu0
    %v541 = vadd.f32 %v516, %v540
    %542 = vdwg.mxu0
    %543 = vst [vmem:[#allocation6] sm:$0xff] %v541
    // Predicated region
    $region26: #{tpu_custom_call.1} parent=1 // pred_check
      _
    $region27: #{tpu_custom_call.1} parent=1 // pred_check_branch
      %545 = sbr.rel (0) target = $region29
    $region28: #{tpu_custom_call.1} parent=1 // pred_region
      %547 = vsyncadd [#allocation7], 0
      %s549 = sshll.u32 [#allocation6], 4
      %s550 = int_to_ptr.vmem [resolvable:$true] %s549
      %s551 = sshll.u32 %s8, 4
      %s552 = int_to_ptr.hbm [resolvable:$true] %s551
      %554 = dma.vmem_to_hbm [thread:$0]  %s550, 128, %s552, [#allocation7]
    $region29: #{tpu_custom_call.1} parent=1 // pred_fallthru
      _
    // Predicated region
    $region30: #{tpu_custom_call.1} parent=1 // pred_check
      _
    $region31: #{tpu_custom_call.1} parent=1 // pred_check_branch
      %556 = sbr.rel (0) target = $region33
    $region32: #{tpu_custom_call.1} parent=1 // pred_region
      %558 = dma.done [#allocation7], 128
    $region33: #{tpu_custom_call.1} parent=1 // pred_fallthru
      _
    %559 = vsyncpa [#allocation7], 1

</llo_original>
